<compile_context>
chip_gen: v6e
topology: v6e:2x2x1
jax: 0.10.0
libtpu: 0.0.40
codegen_flags: <defaults>
</compile_context>

<pallas_src>
import jax
import jax.numpy as jnp
import numpy as np
from jax.experimental import pallas as pl
from jax.experimental.pallas import tpu as pltpu


def _ceil_to(x, m):
    return ((x + m - 1) // m) * m


def _bce_kernel(logits_ref, labels_ref, mask_ref, out_ref):
    x = logits_ref[...].astype(jnp.float32)        # (TB, S, C)
    y = labels_ref[...].astype(jnp.float32)        # (TB, S, C)
    m = mask_ref[...]                              # (TB, S) float32

    # PyTorch nn.BCELoss clamps the log terms at -100.
    log_x = jnp.maximum(jnp.log(x), -100.0)
    log_1mx = jnp.maximum(jnp.log(1.0 - x), -100.0)
    # -(y*log_x + (1-y)*log_1mx) == -(log_1mx + y*(log_x - log_1mx))
    bce = -(log_1mx + y * (log_x - log_1mx))       # (TB, S, C)

    # mask varies only along S -> reduce C first, then weight by the mask row.
    row = jnp.sum(bce, axis=2)                     # (TB, S)
    out_ref[...] = jnp.sum(row * m, axis=1, keepdims=True)   # (TB, 1)


def bce_loss_for_splinker(logits, labels, mask):
    """logits, labels: [B, S, C] probabilities/targets; mask: [B, S]. Returns scalar f32."""
    B, S, C = logits.shape
    mask_f = mask.astype(jnp.float32)

    row_bytes = S * C * jnp.dtype(logits.dtype).itemsize

    if B < 8:
        # Block dims equal to the full array dims satisfy the (8,128) layout rule.
        TB, Bp = B, B
    else:
        Bp = _ceil_to(B, 8)
        TB = 8
        # Grow the batch tile while it divides the (padded) batch and each input
        # tile stays <= ~1 MiB (2 inputs x 2 pipeline buffers << scoped VMEM limit).
        while TB < 256 and Bp % (TB * 2) == 0 and (TB * 2) * row_bytes <= (1 << 20):
            TB *= 2

    pad_b = Bp - B
    if pad_b:
        # Zero padding is safe: padded rows have mask == 0 and are sliced away below.
        logits_in = jnp.pad(logits, ((0, pad_b), (0, 0), (0, 0)))
        labels_in = jnp.pad(labels, ((0, pad_b), (0, 0), (0, 0)))
        mask_in = jnp.pad(mask_f, ((0, pad_b), (0, 0)))
    else:
        logits_in, labels_in, mask_in = logits, labels, mask_f

    per_batch_num = pl.pallas_call(
        _bce_kernel,
        out_shape=jax.ShapeDtypeStruct((Bp, 1), jnp.float32),
        grid_spec=pltpu.PrefetchScalarGridSpec(
            num_scalar_prefetch=0,
            grid=(Bp // TB,),
            in_specs=[
                pl.BlockSpec((TB, S, C), lambda i: (i, 0, 0)),
                pl.BlockSpec((TB, S, C), lambda i: (i, 0, 0)),
                pl.BlockSpec((TB, S), lambda i: (i, 0)),
            ],
            out_specs=pl.BlockSpec((TB, 1), lambda i: (i, 0)),
        ),
        compiler_params=pltpu.CompilerParams(
            dimension_semantics=("parallel",)),
    )(logits_in, labels_in, mask_in)

    num = per_batch_num[:B, 0]                     # (B,) masked BCE sums
    den = jnp.sum(mask_f, axis=1)                  # (B,) sum(mask) per row
    # NOTE: an all-zero mask row yields NaN, matching the PyTorch reference.
    return jnp.mean(num / den)


def _reference(logits, labels, mask):
    clog = lambda t: jnp.maximum(jnp.log(t), -100.0)
    bce = -(labels * clog(logits) + (1.0 - labels) * clog(1.0 - logits))
    m = mask.astype(jnp.float32)
    loss = bce * m[:, :, None]
    loss = jnp.sum(jnp.sum(loss, axis=2), axis=1) / jnp.sum(m, axis=1)
    return jnp.mean(loss)


if __name__ == "__main__":
    B, S, C = 2, 8, 32
    key = jax.random.PRNGKey(0)
    k1, k2 = jax.random.split(key)

    # logits are probabilities in (0, 1), as required by nn.BCELoss
    logits = jax.nn.sigmoid(jax.random.normal(k1, (B, S, C), dtype=jnp.float32))
    labels = (jax.random.uniform(k2, (B, S, C)) < 0.3).astype(jnp.float32)
    # deterministic mask: full length for batch 0, half length for batch 1
    valid_lens = jnp.array([S, S // 2], dtype=jnp.int32)
    mask = (jnp.arange(S)[None, :] < valid_lens[:, None]).astype(jnp.float32)

    out = jax.block_until_ready(bce_loss_for_splinker(logits, labels, mask))

    ref = _reference(logits, labels, mask)
    np.testing.assert_allclose(np.asarray(out), np.asarray(ref), rtol=2e-3, atol=2e-5)

    print("KERNEL_OK")
</pallas_src>

<mosaic_0001>
module attributes {stable_mosaic.version = 11 : i64} {
  func.func @_bce_kernel(%arg0: i32, %arg1: memref<2x8x32xf32, #tpu.memory_space<vmem>>, %arg2: memref<2x8x32xf32, #tpu.memory_space<vmem>>, %arg3: memref<2x8xf32, #tpu.memory_space<vmem>>, %arg4: memref<2x1xf32, #tpu.memory_space<vmem>>) attributes {dimension_semantics = [#tpu.dimension_semantics<parallel>], iteration_bounds = array<i64: 1>, scalar_prefetch = 0 : i64, scratch_operands = 0 : i64, tpu.core_type = #tpu.core_type<tc>, window_params = [{transform_indices = @transform_0, window_bounds = array<i64: 2, 8, 32>}, {transform_indices = @transform_1, window_bounds = array<i64: 2, 8, 32>}, {transform_indices = @transform_2, window_bounds = array<i64: 2, 8>}, {transform_indices = @transform_3, window_bounds = array<i64: 2, 1>}]} {
    %c0 = arith.constant 0 : index
    %c0_0 = arith.constant 0 : index
    %c0_1 = arith.constant 0 : index
    %0 = vector.load %arg1[%c0, %c0_0, %c0_1] : memref<2x8x32xf32, #tpu.memory_space<vmem>>, vector<2x8x32xf32>
    %c0_2 = arith.constant 0 : index
    %c0_3 = arith.constant 0 : index
    %c0_4 = arith.constant 0 : index
    %1 = vector.load %arg2[%c0_2, %c0_3, %c0_4] : memref<2x8x32xf32, #tpu.memory_space<vmem>>, vector<2x8x32xf32>
    %c0_5 = arith.constant 0 : index
    %c0_6 = arith.constant 0 : index
    %2 = vector.load %arg3[%c0_5, %c0_6] : memref<2x8xf32, #tpu.memory_space<vmem>>, vector<2x8xf32>
    %3 = math.log %0 : vector<2x8x32xf32>
    %cst = arith.constant -1.000000e+02 : f32
    %4 = vector.broadcast %cst : f32 to vector<2x8x32xf32>
    %5 = arith.maximumf %3, %4 : vector<2x8x32xf32>
    %cst_7 = arith.constant 1.000000e+00 : f32
    %6 = vector.broadcast %cst_7 : f32 to vector<2x8x32xf32>
    %7 = arith.subf %6, %0 : vector<2x8x32xf32>
    %8 = math.log %7 : vector<2x8x32xf32>
    %cst_8 = arith.constant -1.000000e+02 : f32
    %9 = vector.broadcast %cst_8 : f32 to vector<2x8x32xf32>
    %10 = arith.maximumf %8, %9 : vector<2x8x32xf32>
    %11 = arith.subf %5, %10 : vector<2x8x32xf32>
    %12 = arith.mulf %1, %11 : vector<2x8x32xf32>
    %13 = arith.addf %10, %12 : vector<2x8x32xf32>
    %cst_9 = arith.constant 0.000000e+00 : f32
    %14 = vector.broadcast %cst_9 : f32 to vector<2x8x32xf32>
    %15 = arith.subf %14, %13 : vector<2x8x32xf32>
    %cst_10 = arith.constant dense<0.000000e+00> : vector<2x8xf32>
    %16 = vector.multi_reduction <add>, %15, %cst_10 [2] : vector<2x8x32xf32> to vector<2x8xf32>
    %17 = arith.mulf %16, %2 : vector<2x8xf32>
    %cst_11 = arith.constant dense<0.000000e+00> : vector<2xf32>
    %18 = vector.multi_reduction <add>, %17, %cst_11 [1] : vector<2x8xf32> to vector<2xf32>
    %19 = vector.shape_cast %18 : vector<2xf32> to vector<2x1xf32>
    %c0_12 = arith.constant 0 : index
    %c0_13 = arith.constant 0 : index
    %20 = vector.load %arg4[%c0_12, %c0_13] : memref<2x1xf32, #tpu.memory_space<vmem>>, vector<2x1xf32>
    tpu.vector_store %arg4[%c0_12, %c0_13], %19 {strides = array<i32>} : memref<2x1xf32, #tpu.memory_space<vmem>>, vector<2x1xf32>,
    return
  }
  func.func @transform_0(%arg0: i32) -> (i32, i32, i32) {
    %c0_i32 = arith.constant 0 : i32
    %c0_i32_0 = arith.constant 0 : i32
    %c0_i32_1 = arith.constant 0 : i32
    return %arg0, %c0_i32, %c0_i32_0 : i32, i32, i32
  }
  func.func @transform_1(%arg0: i32) -> (i32, i32, i32) {
    %c0_i32 = arith.constant 0 : i32
    %c0_i32_0 = arith.constant 0 : i32
    %c0_i32_1 = arith.constant 0 : i32
    return %arg0, %c0_i32, %c0_i32_0 : i32, i32, i32
  }
  func.func @transform_2(%arg0: i32) -> (i32, i32) {
    %c0_i32 = arith.constant 0 : i32
    %c0_i32_0 = arith.constant 0 : i32
    return %arg0, %c0_i32 : i32, i32
  }
  func.func @transform_3(%arg0: i32) -> (i32, i32) {
    %c0_i32 = arith.constant 0 : i32
    %c0_i32_0 = arith.constant 0 : i32
    return %arg0, %c0_i32 : i32, i32
  }
}

</mosaic_0001>

<llo_original>
// kernel: tpu_custom_call.1
$region0: #{tpu_custom_call.1}
  #allocation0 [shape = 'u32[]', space=smem, size = 0x4, offset = 0x4, fixed_abs, tag = 'smem constant byte address 0x4 - core index']
  #allocation1 [shape = 'u32[144,128]{1,0:T(1,128)}', space=vmem, size = 0x12000, scoped, tag = 'internal scratch']
  %s0 = inlined_call_operand.hbm [shape: f32[2,8,32], index: 0, kind: input, shape index: {}]
  %s1 = inlined_call_operand.hbm [shape: f32[2,8,32], index: 1, kind: input, shape index: {}]
  %s2 = inlined_call_operand.vmem [shape: f32[2,8], index: 2, kind: input, shape index: {}]
  %s3 = inlined_call_operand.vmem [shape: f32[2,1], index: 3, kind: output, shape index: {}]
  %s4 = sld [smem:[#allocation0]]
  $region30: #{tpu_custom_call.1} parent=0
    _
  %s6 = ssub.s32 1, %s4
  %s7 = scalar_select 0, %s6, %s4
  $region1: #{tpu_custom_call.1} parent=0
    #allocation2 [shape = 'u8[8192]{0}', space=vmem, size = 0x2000, scoped, tag = 'input window, operand 0, single buffered']
    #allocation3 [shape = 's32[1]{0}', space=sflag, size = 0x4, scoped, tag = 'scoped memory for tpu_custom_call.1']
    #allocation4 [shape = 'u8[8192]{0}', space=vmem, size = 0x2000, scoped, tag = 'input window, operand 1, single buffered']
    #allocation5 [shape = 's32[1]{0}', space=sflag, size = 0x4, scoped, tag = 'scoped memory for tpu_custom_call.1']
    %8 = vsyncpa [#allocation3], 0
    %9 = vsyncpa [#allocation5], 0
    // Predicated region
    $region2: #{tpu_custom_call.1} parent=1 // pred_check
      _
    $region3: #{tpu_custom_call.1} parent=1 // pred_check_branch
      %11 = sbr.rel (0) target = $region5
    $region4: #{tpu_custom_call.1} parent=1 // pred_region
      %s13 = ssub.s32 256, 256
      %14 = vsyncadd [#allocation3], %s13
      %s15 = sshll.u32 [#allocation2], 4
      %s16 = int_to_ptr.vmem [resolvable:$true] %s15
      %21 = dma.hbm_to_vmem [thread:$0]  %s0, 256, %s16, [#allocation3], 128, 128, 8
    $region5: #{tpu_custom_call.1} parent=1 // pred_fallthru
      _
    // Predicated region
    $region6: #{tpu_custom_call.1} parent=1 // pred_check
      _
    $region7: #{tpu_custom_call.1} parent=1 // pred_check_branch
      %23 = sbr.rel (0) target = $region9
    $region8: #{tpu_custom_call.1} parent=1 // pred_region
      %s25 = ssub.s32 256, 256
      %26 = vsyncadd [#allocation5], %s25
      %s27 = sshll.u32 [#allocation4], 4
      %s28 = int_to_ptr.vmem [resolvable:$true] %s27
      %33 = dma.hbm_to_vmem [thread:$0]  %s1, 256, %s28, [#allocation5], 128, 128, 8
    $region9: #{tpu_custom_call.1} parent=1 // pred_fallthru
      _
    // Predicated region
    $region10: #{tpu_custom_call.1} parent=1 // pred_check
      _
    $region11: #{tpu_custom_call.1} parent=1 // pred_check_branch
      %35 = sbr.rel (0) target = $region13
    $region12: #{tpu_custom_call.1} parent=1 // pred_region
      _
    $region13: #{tpu_custom_call.1} parent=1 // pred_fallthru
      _
    // Predicated region
    $region14: #{tpu_custom_call.1} parent=1 // pred_check
      _
    $region15: #{tpu_custom_call.1} parent=1 // pred_check_branch
      %37 = sbr.rel (0) target = $region17
    $region16: #{tpu_custom_call.1} parent=1 // pred_region
      %38 = dma.done [#allocation3], 256
    $region17: #{tpu_custom_call.1} parent=1 // pred_fallthru
      _
    // Predicated region
    $region18: #{tpu_custom_call.1} parent=1 // pred_check
      _
    $region19: #{tpu_custom_call.1} parent=1 // pred_check_branch
      %40 = sbr.rel (0) target = $region21
    $region20: #{tpu_custom_call.1} parent=1 // pred_region
      %41 = dma.done [#allocation5], 256
    $region21: #{tpu_custom_call.1} parent=1 // pred_fallthru
      _
    %v42 = vld [vmem:[#allocation2] sm:$0xff]
    %v43 = vld [vmem:[#allocation2 + $0x8] sm:$0xff]
    %v44 = vld [vmem:[#allocation4] sm:$0xff]
    %v45 = vld [vmem:[#allocation4 + $0x8] sm:$0xff]
    %v46 = vld [vmem:[%s2] sm:$0x3]
    %v47 = vlog2.pop %v42
    %v48 = vmul.f32 %v47, 0.6931472
    %v49 = vlog2.pop %v43
    %v50 = vmul.f32 %v49, 0.6931472
    %v51 = vmax.f32 %v48, -100.0
    %v52 = vmax.f32 %v50, -100.0
    %v53 = vsub.f32 1.0, %v42
    %v54 = vsub.f32 1.0, %v43
    %v55 = vlog2.pop %v53
    %v56 = vmul.f32 %v55, 0.6931472
    %v57 = vlog2.pop %v54
    %v58 = vmul.f32 %v57, 0.6931472
    %v59 = vmax.f32 %v56, -100.0
    %v60 = vmax.f32 %v58, -100.0
    %v61 = vsub.f32 %v51, %v59
    %v62 = vsub.f32 %v52, %v60
    %v63 = vmul.f32 %v44, %v61
    %v64 = vmul.f32 %v45, %v62
    %v65 = vadd.f32 %v59, %v63
    %v66 = vadd.f32 %v60, %v64
    %v67 = vsub.f32 0.0, %v65
    %v68 = vsub.f32 0.0, %v66
    %vm69 = vcmask 261120
    %v70 = vsel %vm69, %v67, 0.0
    %71 = vadd.xlane.f32.xlu0 %v70
    %v72 = vpop.xlane.xlu0 %71
    %v73 = vsel %vm69, %v68, 0.0
    %74 = vadd.xlane.f32.xlu0 %v73
    %v75 = vpop.xlane.xlu0 %74
    %v77 = vlaneseq
    %v78 = vshrl.u32 %v77, 7
    %v79 = vsub.s32 0, %v78
    %v80 = vrot.slane %v46, %v79
    %82 = vbcast.lane.b32.xlu0 %v80, 256
    %v83 = vpop.permute.xlu0 %82
    %v84 = vlaneseq
    %v85 = vshrl.u32 %v84, 7
    %v86 = vsub.s32 1, %v85
    %v87 = vrot.slane %v46, %v86
    %89 = vbcast.lane.b32.xlu0 %v87, 256
    %v90 = vpop.permute.xlu0 %89
    %v93 = vmul.f32 %v72, %v83
    %v94 = vmul.f32 %v75, %v90
    %97 = vset.pattern.permute.xlu0 0
    %98 = vperm.xlu0 %97, %v93
    %v99 = vpop.permute.xlu0 %98
    %100 = vset.pattern.permute.xlu0 0
    %101 = vperm.xlu0 %100, %v94
    %v102 = vpop.permute.xlu0 %101
    %v103 = vlaneseq
    %v104 = vand.u32 %v103, 127
    %v105 = vlaneseq
    %v106 = vshrl.u32 %v105, 7
    %v107 = vsub.s32 %v104, %v106
    %v108 = vrot.slane %v99, %v107
    %v109 = vlaneseq
    %v110 = vshrl.u32 %v109, 7
    %v111 = vsub.s32 %v104, %v110
    %v112 = vrot.slane %v102, %v111
    %vm113 = vcmask 1041409
    %v114 = vsel %vm113, %v112, %v108
    %vm116 = vcmask 58368
    %v117 = vsel %vm116, %v114, 0.0
    %118 = vadd.xlane.f32.xlu0 %v117
    %v119 = vpop.xlane.xlu0 %118
    %vm120 = vcmask 1024
    %121 = vst.msk [vmem:[%s3] sm:$0x3] %vm120, %v119
    // Predicated region
    $region22: #{tpu_custom_call.1} parent=1 // pred_check
      _
    $region23: #{tpu_custom_call.1} parent=1 // pred_check_branch
      %123 = sbr.rel (0) target = $region25
    $region24: #{tpu_custom_call.1} parent=1 // pred_region
      _
    $region25: #{tpu_custom_call.1} parent=1 // pred_fallthru
      _
    // Predicated region
    $region26: #{tpu_custom_call.1} parent=1 // pred_check
      _
    $region27: #{tpu_custom_call.1} parent=1 // pred_check_branch
      %125 = sbr.rel (0) target = $region29
    $region28: #{tpu_custom_call.1} parent=1 // pred_region
      _
    $region29: #{tpu_custom_call.1} parent=1 // pred_fallthru
      _
    %126 = vsyncpa [#allocation3], 1
    %127 = vsyncpa [#allocation5], 1

</llo_original>
